<compile_context>
chip_gen: v7x
topology: tpu7x:2x2x1
jax: 0.10.0
libtpu: 0.0.40
codegen_flags: <defaults>
</compile_context>

<pallas_src>
import functools

import jax
import jax.numpy as jnp
from jax import lax
from jax.experimental import pallas as pl
from jax.experimental.pallas import tpu as pltpu

IGNORE_LABEL = 255                 # config.TRAIN.IGNORE_LABEL
BALANCE_WEIGHTS = (0.4, 1.0)       # weights for pred[0], pred[1] in level_sem_loss
# sigmoid(x) > 0.8  <=>  x > log(0.8/0.2) = log(4): compare in logit domain.
LOGIT_BD_THRESH = 1.3862943611198906

N_STATS = 7  # acc_sum, pixel_sum, ce0_sum, ce1_sum, bce_bd_sum, ce_sb_sum, sb_count

# VMEM policy: raise the scoped limit explicitly (v5e default is 16 MiB) but stay
# well under v7x's 64 MiB physical VMEM; size tiles so double-buffered inputs fit
# in ~32 MiB.
_VMEM_LIMIT_BYTES = 48 * 1024 * 1024
_TILE_INPUT_BUDGET = 32 * 1024 * 1024
_MAX_TILE_ROWS = 512


def _bce_with_logits(x, y):
    # numerically stable: max(x,0) - x*y + log(1 + exp(-|x|))
    return jnp.maximum(x, 0.0) - x * y + jnp.log1p(jnp.exp(-jnp.abs(x)))


def _loss_stats_kernel(l0_ref, l1_ref, bd_ref, lab_ref, bdg_ref, out_ref, *,
                       cps, tr, r_total, needs_mask):
    """Accumulate every reduction of Custom_loss_cls.forward into a resident
    per-(batch, core-split) (N_STATS, FR, 128) output block of vreg partial sums."""
    k = pl.program_id(2)   # pixel-chunk axis (reduction axis, innermost)

    @pl.when(k == 0)
    def _init():
        out_ref[...] = jnp.zeros_like(out_ref)

    l0 = l0_ref[...].astype(jnp.float32)        # (C, TR, 128)
    l1 = l1_ref[...].astype(jnp.float32)        # (C, TR, 128)
    bd = bd_ref[...].astype(jnp.float32)        # (TR, 128) boundary logits
    label = lab_ref[...].astype(jnp.int32)      # (TR, 128)
    bd_gt = bdg_ref[...].astype(jnp.float32)    # (TR, 128)

    num_classes = l1.shape[0]
    ciota = lax.broadcasted_iota(jnp.int32, l1.shape, 0)   # (C, TR, 128)
    lab_hit = ciota == label[None]                         # shared channel==label mask

    # Hoisted channel maxima (m1 is reused by the accuracy check).
    m0 = jnp.max(l0, axis=0)                    # (TR, 128)
    m1 = jnp.max(l1, axis=0)

    # logsumexp over channels (cross-vreg VPU adds; no log-softmax temporaries).
    lse0 = m0 + jnp.log(jnp.sum(jnp.exp(l0 - m0[None]), axis=0))
    lse1 = m1 + jnp.log(jnp.sum(jnp.exp(l1 - m1[None]), axis=0))

    # Gathered logit at the label channel: CE = lse - logit[label].
    gl0 = jnp.sum(jnp.where(lab_hit, l0, 0.0), axis=0)
    gl1 = jnp.sum(jnp.where(lab_hit, l1, 0.0), axis=0)

    in_range = (label >= 0) & (label < num_classes)
    ce0 = jnp.where(in_range, lse0 - gl0, 0.0)   # one-hot soft-target CE, head 0
    ce1 = jnp.where(in_range, lse1 - gl1, 0.0)   # one-hot soft-target CE, head 1

    # pixel_acc: argmax(l1) == label  <=>  label-channel logit attains the channel max.
    # (tie-break differs from torch.argmax only on exact float ties — measure zero)
    acc_p = jnp.where(in_range & (gl1 >= m1), 1.0, 0.0)
    pix_p = jnp.where(label >= 0, 1.0, 0.0)     # matches module's pixel_acc (keeps 255)

    # bd_loss: BCE-with-logits on the boundary head.
    bce_bd = _bce_with_logits(bd, bd_gt)

    # bd_label = where(sigmoid(bd) > 0.8, label, IGNORE); masked hard CE on pred[1].
    sel = bd > LOGIT_BD_THRESH
    ce_sb = jnp.where(sel, ce1, 0.0)                        # ce1 already 0 outside [0,C)
    sbcnt = jnp.where(sel & (label != IGNORE_LABEL), 1.0, 0.0)

    if needs_mask:
        # Ragged tail / duplicated (clamped) blocks: zero contributions of rows >= R.
        row0 = (pl.program_id(1) * cps + k) * tr
        live = (row0 + lax.broadcasted_iota(jnp.int32, label.shape, 0)) < r_total
    else:
        live = None

    fr = out_ref.shape[-2]

    def _accumulate(slot, v):
        if live is not None:
            v = jnp.where(live, v, 0.0)
        t = v.shape[-2]
        if t != fr:
            # (TR, 128) -> (FR, 128) partial sums: cross-vreg VPU adds only.
            v = jnp.sum(v.reshape(t // fr, fr, v.shape[-1]), axis=0)
        out_ref[slot] += v

    _accumulate(0, acc_p)
    _accumulate(1, pix_p)
    _accumulate(2, ce0)
    _accumulate(3, ce1)
    _accumulate(4, bce_bd)
    _accumulate(5, ce_sb)
    _accumulate(6, sbcnt)


def _derive_tile_rows(r, c, logit_bytes, small_bytes, max_tile_rows):
    """VMEM-budget-derived sublane-row tile (multiple of 16 for f32/bf16 legality)."""
    per_row = 2 * 128 * (2 * c * logit_bytes + small_bytes)   # double-buffered inputs
    tr = max(_TILE_INPUT_BUDGET // per_row, 1)
    tr = min(tr, _MAX_TILE_ROWS, r)
    if max_tile_rows is not None:
        tr = min(tr, max_tile_rows)
    if r >= 16:
        tr = max(16, (tr // 16) * 16)
    elif r >= 8:
        tr = max(8, (tr // 8) * 8)
    else:
        tr = r
    return int(tr)


def custom_loss_cls(pred, level_label, vcf_label, bd_gt, *,
                    max_tile_rows=None, core_splits=2):
    """JAX/Pallas equivalent of Custom_loss_cls.forward.

    pred = [pred0 (N,C,H,W), pred1 (N,C,H,W), pred2 (N,1,H,W), pred_vcf (N,Cv)]
    level_label (N,H,W) int, vcf_label (N,Cv), bd_gt (N,H,W).
    Logits may be bf16 (recommended; math is f32 in-kernel), labels keep native dtype.
    """
    pred0, pred1, pred2, pred_vcf = pred
    n, c, h, w = pred1.shape
    hw = h * w

    # TODO(synk): the bilinear-resize branch (pred spatial size != label size) is not
    # taken here — preds are built at label resolution, so no resize kernel is needed.
    assert hw % 128 == 0, "H*W must be a multiple of the 128-lane width"
    r = hw // 128

    logit_bytes = jnp.dtype(pred1.dtype).itemsize
    small_bytes = (jnp.dtype(pred2.dtype).itemsize
                   + jnp.dtype(level_label.dtype).itemsize
                   + jnp.dtype(bd_gt.dtype).itemsize)

    tr = _derive_tile_rows(r, c, logit_bytes, small_bytes, max_tile_rows)
    chunks = pl.cdiv(r, tr)
    splits = max(1, min(int(core_splits), chunks))   # v7x: both TCs busy even for N=1
    cps = pl.cdiv(chunks, splits)                    # chunks per split
    needs_clamp = splits * cps > chunks              # uneven split -> duplicate blocks
    needs_mask = splits * cps * tr != r              # ragged tail or duplicate blocks
    fr = 8 if tr % 8 == 0 else tr                    # folded-accumulator sublane height
    last_blk = chunks - 1

    if needs_clamp:
        def _blk(s, k):
            return jnp.minimum(s * cps + k, last_blk)
    else:
        def _blk(s, k):
            return s * cps + k

    # Free, transpose-less reshapes (row-major NCHW -> (N, C, R, 128)); no host casts.
    l0 = pred0.reshape(n, c, r, 128)
    l1 = pred1.reshape(n, c, r, 128)
    bdl = pred2.reshape(n, r, 128)
    lab = level_label.reshape(n, r, 128)
    bdg = bd_gt.reshape(n, r, 128)

    kernel = functools.partial(_loss_stats_kernel, cps=cps, tr=tr, r_total=r,
                               needs_mask=needs_mask)

    npix = n * hw
    cost = pl.CostEstimate(
        flops=15 * c * npix,
        transcendentals=(2 * c + 4) * npix,
        bytes_accessed=npix * (2 * c * logit_bytes + small_bytes)
        + n * splits * N_STATS * fr * 128 * 4,
    )

    stats = pl.pallas_call(
        kernel,
        out_shape=jax.ShapeDtypeStruct((n, splits, N_STATS, fr, 128), jnp.float32),
        grid=(n, splits, cps),
        in_specs=[
            pl.BlockSpec((None, c, tr, 128), lambda b, s, k: (b, 0, _blk(s, k), 0)),
            pl.BlockSpec((None, c, tr, 128), lambda b, s, k: (b, 0, _blk(s, k), 0)),
            pl.BlockSpec((None, tr, 128), lambda b, s, k: (b, _blk(s, k), 0)),
            pl.BlockSpec((None, tr, 128), lambda b, s, k: (b, _blk(s, k), 0)),
            pl.BlockSpec((None, tr, 128), lambda b, s, k: (b, _blk(s, k), 0)),
        ],
        out_specs=pl.BlockSpec((None, None, N_STATS, fr, 128),
                               lambda b, s, k: (b, s, 0, 0, 0)),
        compiler_params=pltpu.CompilerParams(
            dimension_semantics=("parallel", "parallel", "arbitrary"),
            vmem_limit_bytes=_VMEM_LIMIT_BYTES),
        cost_estimate=cost,
    )(l0, l1, bdl, lab, bdg)

    # Tiny finalization: one reduce over the (N, splits, N_STATS, FR, 128) partials.
    s = jnp.sum(stats, axis=(0, 1, 3, 4))
    acc_sum, pixel_sum = s[0], s[1]
    ce0_sum, ce1_sum = s[2], s[3]
    bce_bd_sum, ce_sb_sum, sb_count = s[4], s[5], s[6]

    pix = jnp.float32(n * hw)
    acc = acc_sum / (pixel_sum + 1e-10)
    # soft-target (one-hot) CE averages over all pixels, matching the module's usage.
    loss_s = BALANCE_WEIGHTS[0] * (ce0_sum / pix) + BALANCE_WEIGHTS[1] * (ce1_sum / pix)
    loss_b = bce_bd_sum / pix
    loss_sb = ce_sb_sum / jnp.maximum(sb_count, 1.0)   # mean over non-ignored pixels

    # vcf head is a tiny (N, Cv) tensor: plain jnp fuses with the scalar epilogue and
    # avoids a second pallas_call dispatch.
    loss_cls_vcf = jnp.mean(_bce_with_logits(pred_vcf.astype(jnp.float32),
                                             vcf_label.astype(jnp.float32)))

    loss = loss_s + loss_b + loss_sb + loss_cls_vcf
    return (loss[None], [pred1, pred_vcf], acc, [loss_s, loss_b, loss_cls_vcf], None)


if __name__ == "__main__":
    key = jax.random.PRNGKey(0)
    N, C, H, W, CV = 2, 4, 128, 128, 4
    k0, k1, k2, k3, k4, k5, k6 = jax.random.split(key, 7)

    # bf16 logits on the two big semantic heads (perf review): halves HBM traffic;
    # all in-kernel math stays f32.
    pred0 = jax.random.normal(k0, (N, C, H, W), jnp.float32).astype(jnp.bfloat16)
    pred1 = jax.random.normal(k1, (N, C, H, W), jnp.float32).astype(jnp.bfloat16)
    pred2 = jax.random.normal(k2, (N, 1, H, W), jnp.float32)       # boundary head
    pred_vcf = jax.random.normal(k3, (N, CV), jnp.float32)         # vcf cls head
    level_label = jax.random.randint(k4, (N, H, W), 0, C, dtype=jnp.int32)
    vcf_label = (jax.random.uniform(k5, (N, CV)) > 0.5).astype(jnp.float32)
    bd_gt = (jax.random.uniform(k6, (N, H, W)) > 0.9).astype(jnp.float32)

    # max_tile_rows=16 keeps the demo tiny while still exercising the multi-chunk
    # accumulator and the 2-way core-split axis (8 chunks -> 2 splits x 4 steps).
    out = custom_loss_cls([pred0, pred1, pred2, pred_vcf],
                          level_label, vcf_label, bd_gt, max_tile_rows=16)
    jax.block_until_ready(out[0])
    print("KERNEL_OK")
</pallas_src>

<mosaic_0001>
module attributes {stable_mosaic.version = 11 : i64} {
  func.func @_loss_stats_kernel(%arg0: i32, %arg1: i32, %arg2: i32, %arg3: memref<1x4x16x128xbf16, #tpu.memory_space<vmem>>, %arg4: memref<1x4x16x128xbf16, #tpu.memory_space<vmem>>, %arg5: memref<1x16x128xf32, #tpu.memory_space<vmem>>, %arg6: memref<1x16x128xi32, #tpu.memory_space<vmem>>, %arg7: memref<1x16x128xf32, #tpu.memory_space<vmem>>, %arg8: memref<1x1x7x8x128xf32, #tpu.memory_space<vmem>>) attributes {dimension_semantics = [#tpu.dimension_semantics<parallel>, #tpu.dimension_semantics<parallel>, #tpu.dimension_semantics<arbitrary>], iteration_bounds = array<i64: 2, 2, 4>, scalar_prefetch = 0 : i64, scratch_operands = 0 : i64, tpu.core_type = #tpu.core_type<tc>, window_params = [{transform_indices = @transform_0, window_bounds = array<i64: 1, 4, 16, 128>}, {transform_indices = @transform_1, window_bounds = array<i64: 1, 4, 16, 128>}, {transform_indices = @transform_2, window_bounds = array<i64: 1, 16, 128>}, {transform_indices = @transform_3, window_bounds = array<i64: 1, 16, 128>}, {transform_indices = @transform_4, window_bounds = array<i64: 1, 16, 128>}, {transform_indices = @transform_5, window_bounds = array<i64: 1, 1, 7, 8, 128>}]} {
    %c0_i32 = arith.constant 0 : i32
    %0 = arith.cmpi eq, %arg2, %c0_i32 : i32
    %1 = arith.extui %0 : i1 to i32
    %c0_i32_0 = arith.constant 0 : i32
    %2 = arith.cmpi ne, %1, %c0_i32_0 : i32
    scf.if %2 {
      %cst_109 = arith.constant 0.000000e+00 : f32
      %138 = vector.broadcast %cst_109 : f32 to vector<7x8x128xf32>
      %c0_110 = arith.constant 0 : index
      %c0_111 = arith.constant 0 : index
      %c0_112 = arith.constant 0 : index
      %c0_113 = arith.constant 0 : index
      %c0_114 = arith.constant 0 : index
      %139 = vector.load %arg8[%c0_110, %c0_111, %c0_112, %c0_113, %c0_114] : memref<1x1x7x8x128xf32, #tpu.memory_space<vmem>>, vector<1x1x7x8x128xf32>
      %140 = vector.shape_cast %139 : vector<1x1x7x8x128xf32> to vector<7x8x128xf32>
      %141 = vector.shape_cast %138 : vector<7x8x128xf32> to vector<1x1x7x8x128xf32>
      tpu.vector_store %arg8[%c0_110, %c0_111, %c0_112, %c0_113, %c0_114], %141 {strides = array<i32>} : memref<1x1x7x8x128xf32, #tpu.memory_space<vmem>>, vector<1x1x7x8x128xf32>,
    } else {
    }
    %c0 = arith.constant 0 : index
    %c0_1 = arith.constant 0 : index
    %c0_2 = arith.constant 0 : index
    %c0_3 = arith.constant 0 : index
    %3 = vector.load %arg3[%c0, %c0_1, %c0_2, %c0_3] : memref<1x4x16x128xbf16, #tpu.memory_space<vmem>>, vector<1x4x16x128xbf16>
    %4 = vector.shape_cast %3 : vector<1x4x16x128xbf16> to vector<4x16x128xbf16>
    %5 = arith.extf %4 : vector<4x16x128xbf16> to vector<4x16x128xf32>
    %c0_4 = arith.constant 0 : index
    %c0_5 = arith.constant 0 : index
    %c0_6 = arith.constant 0 : index
    %c0_7 = arith.constant 0 : index
    %6 = vector.load %arg4[%c0_4, %c0_5, %c0_6, %c0_7] : memref<1x4x16x128xbf16, #tpu.memory_space<vmem>>, vector<1x4x16x128xbf16>
    %7 = vector.shape_cast %6 : vector<1x4x16x128xbf16> to vector<4x16x128xbf16>
    %8 = arith.extf %7 : vector<4x16x128xbf16> to vector<4x16x128xf32>
    %c0_8 = arith.constant 0 : index
    %c0_9 = arith.constant 0 : index
    %c0_10 = arith.constant 0 : index
    %9 = vector.load %arg5[%c0_8, %c0_9, %c0_10] : memref<1x16x128xf32, #tpu.memory_space<vmem>>, vector<1x16x128xf32>
    %10 = vector.shape_cast %9 : vector<1x16x128xf32> to vector<16x128xf32>
    %c0_11 = arith.constant 0 : index
    %c0_12 = arith.constant 0 : index
    %c0_13 = arith.constant 0 : index
    %11 = vector.load %arg6[%c0_11, %c0_12, %c0_13] : memref<1x16x128xi32, #tpu.memory_space<vmem>>, vector<1x16x128xi32>
    %12 = vector.shape_cast %11 : vector<1x16x128xi32> to vector<16x128xi32>
    %c0_14 = arith.constant 0 : index
    %c0_15 = arith.constant 0 : index
    %c0_16 = arith.constant 0 : index
    %13 = vector.load %arg7[%c0_14, %c0_15, %c0_16] : memref<1x16x128xf32, #tpu.memory_space<vmem>>, vector<1x16x128xf32>
    %14 = vector.shape_cast %13 : vector<1x16x128xf32> to vector<16x128xf32>
    %15 = tpu.iota {dimensions = array<i32: 0>} : vector<4x16x128xi32>
    %16 = vector.shape_cast %12 : vector<16x128xi32> to vector<1x16x128xi32>
    %17 = vector.broadcast %16 : vector<1x16x128xi32> to vector<4x16x128xi32>
    %18 = arith.cmpi eq, %15, %17 : vector<4x16x128xi32>
    %cst = arith.constant dense<0xFF800000> : vector<16x128xf32>
    %19 = vector.multi_reduction <maximumf>, %5, %cst [0] : vector<4x16x128xf32> to vector<16x128xf32>
    %cst_17 = arith.constant dense<0xFF800000> : vector<16x128xf32>
    %20 = vector.multi_reduction <maximumf>, %8, %cst_17 [0] : vector<4x16x128xf32> to vector<16x128xf32>
    %21 = vector.shape_cast %19 : vector<16x128xf32> to vector<1x16x128xf32>
    %22 = vector.broadcast %21 : vector<1x16x128xf32> to vector<4x16x128xf32>
    %23 = arith.subf %5, %22 : vector<4x16x128xf32>
    %24 = math.exp %23 : vector<4x16x128xf32>
    %cst_18 = arith.constant dense<0.000000e+00> : vector<16x128xf32>
    %25 = vector.multi_reduction <add>, %24, %cst_18 [0] : vector<4x16x128xf32> to vector<16x128xf32>
    %26 = math.log %25 : vector<16x128xf32>
    %27 = arith.addf %19, %26 : vector<16x128xf32>
    %28 = vector.shape_cast %20 : vector<16x128xf32> to vector<1x16x128xf32>
    %29 = vector.broadcast %28 : vector<1x16x128xf32> to vector<4x16x128xf32>
    %30 = arith.subf %8, %29 : vector<4x16x128xf32>
    %31 = math.exp %30 : vector<4x16x128xf32>
    %cst_19 = arith.constant dense<0.000000e+00> : vector<16x128xf32>
    %32 = vector.multi_reduction <add>, %31, %cst_19 [0] : vector<4x16x128xf32> to vector<16x128xf32>
    %33 = math.log %32 : vector<16x128xf32>
    %34 = arith.addf %20, %33 : vector<16x128xf32>
    %cst_20 = arith.constant 0.000000e+00 : f32
    %35 = vector.broadcast %cst_20 : f32 to vector<4x16x128xf32>
    %36 = arith.select %18, %5, %35 : vector<4x16x128xi1>, vector<4x16x128xf32>
    %cst_21 = arith.constant dense<0.000000e+00> : vector<16x128xf32>
    %37 = vector.multi_reduction <add>, %36, %cst_21 [0] : vector<4x16x128xf32> to vector<16x128xf32>
    %cst_22 = arith.constant 0.000000e+00 : f32
    %38 = vector.broadcast %cst_22 : f32 to vector<4x16x128xf32>
    %39 = arith.select %18, %8, %38 : vector<4x16x128xi1>, vector<4x16x128xf32>
    %cst_23 = arith.constant dense<0.000000e+00> : vector<16x128xf32>
    %40 = vector.multi_reduction <add>, %39, %cst_23 [0] : vector<4x16x128xf32> to vector<16x128xf32>
    %c0_i32_24 = arith.constant 0 : i32
    %41 = vector.broadcast %c0_i32_24 : i32 to vector<16x128xi32>
    %42 = arith.cmpi sge, %12, %41 : vector<16x128xi32>
    %c4_i32 = arith.constant 4 : i32
    %43 = vector.broadcast %c4_i32 : i32 to vector<16x128xi32>
    %44 = arith.cmpi slt, %12, %43 : vector<16x128xi32>
    %45 = arith.andi %42, %44 : vector<16x128xi1>
    %46 = arith.subf %27, %37 : vector<16x128xf32>
    %cst_25 = arith.constant 0.000000e+00 : f32
    %47 = vector.broadcast %cst_25 : f32 to vector<16x128xf32>
    %48 = arith.select %45, %46, %47 : vector<16x128xi1>, vector<16x128xf32>
    %49 = arith.subf %34, %40 : vector<16x128xf32>
    %cst_26 = arith.constant 0.000000e+00 : f32
    %50 = vector.broadcast %cst_26 : f32 to vector<16x128xf32>
    %51 = arith.select %45, %49, %50 : vector<16x128xi1>, vector<16x128xf32>
    %52 = arith.cmpf oge, %40, %20 : vector<16x128xf32>
    %53 = arith.andi %45, %52 : vector<16x128xi1>
    %cst_27 = arith.constant 1.000000e+00 : f32
    %cst_28 = arith.constant 0.000000e+00 : f32
    %54 = vector.broadcast %cst_27 : f32 to vector<16x128xf32>
    %55 = vector.broadcast %cst_28 : f32 to vector<16x128xf32>
    %56 = arith.select %53, %54, %55 : vector<16x128xi1>, vector<16x128xf32>
    %c0_i32_29 = arith.constant 0 : i32
    %57 = vector.broadcast %c0_i32_29 : i32 to vector<16x128xi32>
    %58 = arith.cmpi sge, %12, %57 : vector<16x128xi32>
    %cst_30 = arith.constant 1.000000e+00 : f32
    %cst_31 = arith.constant 0.000000e+00 : f32
    %59 = vector.broadcast %cst_30 : f32 to vector<16x128xf32>
    %60 = vector.broadcast %cst_31 : f32 to vector<16x128xf32>
    %61 = arith.select %58, %59, %60 : vector<16x128xi1>, vector<16x128xf32>
    %cst_32 = arith.constant 0.000000e+00 : f32
    %62 = vector.broadcast %cst_32 : f32 to vector<16x128xf32>
    %63 = arith.maximumf %10, %62 : vector<16x128xf32>
    %64 = arith.mulf %10, %14 : vector<16x128xf32>
    %65 = arith.subf %63, %64 : vector<16x128xf32>
    %66 = math.absf %10 : vector<16x128xf32>
    %cst_33 = arith.constant 0.000000e+00 : f32
    %67 = vector.broadcast %cst_33 : f32 to vector<16x128xf32>
    %68 = arith.subf %67, %66 : vector<16x128xf32>
    %69 = math.exp %68 : vector<16x128xf32>
    %70 = math.log1p %69 : vector<16x128xf32>
    %71 = arith.addf %65, %70 : vector<16x128xf32>
    %cst_34 = arith.constant 1.38629436 : f32
    %72 = vector.broadcast %cst_34 : f32 to vector<16x128xf32>
    %73 = arith.cmpf ogt, %10, %72 : vector<16x128xf32>
    %cst_35 = arith.constant 0.000000e+00 : f32
    %74 = vector.broadcast %cst_35 : f32 to vector<16x128xf32>
    %75 = arith.select %73, %51, %74 : vector<16x128xi1>, vector<16x128xf32>
    %c255_i32 = arith.constant 255 : i32
    %76 = vector.broadcast %c255_i32 : i32 to vector<16x128xi32>
    %77 = arith.cmpi ne, %12, %76 : vector<16x128xi32>
    %78 = arith.andi %73, %77 : vector<16x128xi1>
    %cst_36 = arith.constant 1.000000e+00 : f32
    %cst_37 = arith.constant 0.000000e+00 : f32
    %79 = vector.broadcast %cst_36 : f32 to vector<16x128xf32>
    %80 = vector.broadcast %cst_37 : f32 to vector<16x128xf32>
    %81 = arith.select %78, %79, %80 : vector<16x128xi1>, vector<16x128xf32>
    %82 = vector.shape_cast %56 : vector<16x128xf32> to vector<2x8x128xf32>
    %cst_38 = arith.constant dense<0.000000e+00> : vector<8x128xf32>
    %83 = vector.multi_reduction <add>, %82, %cst_38 [0] : vector<2x8x128xf32> to vector<8x128xf32>
    %c0_39 = arith.constant 0 : index
    %c0_40 = arith.constant 0 : index
    %c0_41 = arith.constant 0 : index
    %c0_42 = arith.constant 0 : index
    %c0_43 = arith.constant 0 : index
    %84 = vector.load %arg8[%c0_39, %c0_40, %c0_41, %c0_42, %c0_43] : memref<1x1x7x8x128xf32, #tpu.memory_space<vmem>>, vector<1x1x1x8x128xf32>
    %85 = vector.shape_cast %84 : vector<1x1x1x8x128xf32> to vector<8x128xf32>
    %86 = arith.addf %85, %83 : vector<8x128xf32>
    %c0_44 = arith.constant 0 : index
    %c0_45 = arith.constant 0 : index
    %c0_46 = arith.constant 0 : index
    %c0_47 = arith.constant 0 : index
    %c0_48 = arith.constant 0 : index
    %87 = vector.load %arg8[%c0_44, %c0_45, %c0_46, %c0_47, %c0_48] : memref<1x1x7x8x128xf32, #tpu.memory_space<vmem>>, vector<1x1x1x8x128xf32>
    %88 = vector.shape_cast %87 : vector<1x1x1x8x128xf32> to vector<8x128xf32>
    %89 = vector.shape_cast %86 : vector<8x128xf32> to vector<1x1x1x8x128xf32>
    tpu.vector_store %arg8[%c0_44, %c0_45, %c0_46, %c0_47, %c0_48], %89 {strides = array<i32>} : memref<1x1x7x8x128xf32, #tpu.memory_space<vmem>>, vector<1x1x1x8x128xf32>,
    %90 = vector.shape_cast %61 : vector<16x128xf32> to vector<2x8x128xf32>
    %cst_49 = arith.constant dense<0.000000e+00> : vector<8x128xf32>
    %91 = vector.multi_reduction <add>, %90, %cst_49 [0] : vector<2x8x128xf32> to vector<8x128xf32>
    %c0_50 = arith.constant 0 : index
    %c0_51 = arith.constant 0 : index
    %c1 = arith.constant 1 : index
    %c0_52 = arith.constant 0 : index
    %c0_53 = arith.constant 0 : index
    %92 = vector.load %arg8[%c0_50, %c0_51, %c1, %c0_52, %c0_53] : memref<1x1x7x8x128xf32, #tpu.memory_space<vmem>>, vector<1x1x1x8x128xf32>
    %93 = vector.shape_cast %92 : vector<1x1x1x8x128xf32> to vector<8x128xf32>
    %94 = arith.addf %93, %91 : vector<8x128xf32>
    %c0_54 = arith.constant 0 : index
    %c0_55 = arith.constant 0 : index
    %c1_56 = arith.constant 1 : index
    %c0_57 = arith.constant 0 : index
    %c0_58 = arith.constant 0 : index
    %95 = vector.load %arg8[%c0_54, %c0_55, %c1_56, %c0_57, %c0_58] : memref<1x1x7x8x128xf32, #tpu.memory_space<vmem>>, vector<1x1x1x8x128xf32>
    %96 = vector.shape_cast %95 : vector<1x1x1x8x128xf32> to vector<8x128xf32>
    %97 = vector.shape_cast %94 : vector<8x128xf32> to vector<1x1x1x8x128xf32>
    tpu.vector_store %arg8[%c0_54, %c0_55, %c1_56, %c0_57, %c0_58], %97 {strides = array<i32>} : memref<1x1x7x8x128xf32, #tpu.memory_space<vmem>>, vector<1x1x1x8x128xf32>,
    %98 = vector.shape_cast %48 : vector<16x128xf32> to vector<2x8x128xf32>
    %cst_59 = arith.constant dense<0.000000e+00> : vector<8x128xf32>
    %99 = vector.multi_reduction <add>, %98, %cst_59 [0] : vector<2x8x128xf32> to vector<8x128xf32>
    %c0_60 = arith.constant 0 : index
    %c0_61 = arith.constant 0 : index
    %c2 = arith.constant 2 : index
    %c0_62 = arith.constant 0 : index
    %c0_63 = arith.constant 0 : index
    %100 = vector.load %arg8[%c0_60, %c0_61, %c2, %c0_62, %c0_63] : memref<1x1x7x8x128xf32, #tpu.memory_space<vmem>>, vector<1x1x1x8x128xf32>
    %101 = vector.shape_cast %100 : vector<1x1x1x8x128xf32> to vector<8x128xf32>
    %102 = arith.addf %101, %99 : vector<8x128xf32>
    %c0_64 = arith.constant 0 : index
    %c0_65 = arith.constant 0 : index
    %c2_66 = arith.constant 2 : index
    %c0_67 = arith.constant 0 : index
    %c0_68 = arith.constant 0 : index
    %103 = vector.load %arg8[%c0_64, %c0_65, %c2_66, %c0_67, %c0_68] : memref<1x1x7x8x128xf32, #tpu.memory_space<vmem>>, vector<1x1x1x8x128xf32>
    %104 = vector.shape_cast %103 : vector<1x1x1x8x128xf32> to vector<8x128xf32>
    %105 = vector.shape_cast %102 : vector<8x128xf32> to vector<1x1x1x8x128xf32>
    tpu.vector_store %arg8[%c0_64, %c0_65, %c2_66, %c0_67, %c0_68], %105 {strides = array<i32>} : memref<1x1x7x8x128xf32, #tpu.memory_space<vmem>>, vector<1x1x1x8x128xf32>,
    %106 = vector.shape_cast %51 : vector<16x128xf32> to vector<2x8x128xf32>
    %cst_69 = arith.constant dense<0.000000e+00> : vector<8x128xf32>
    %107 = vector.multi_reduction <add>, %106, %cst_69 [0] : vector<2x8x128xf32> to vector<8x128xf32>
    %c0_70 = arith.constant 0 : index
    %c0_71 = arith.constant 0 : index
    %c3 = arith.constant 3 : index
    %c0_72 = arith.constant 0 : index
    %c0_73 = arith.constant 0 : index
    %108 = vector.load %arg8[%c0_70, %c0_71, %c3, %c0_72, %c0_73] : memref<1x1x7x8x128xf32, #tpu.memory_space<vmem>>, vector<1x1x1x8x128xf32>
    %109 = vector.shape_cast %108 : vector<1x1x1x8x128xf32> to vector<8x128xf32>
    %110 = arith.addf %109, %107 : vector<8x128xf32>
    %c0_74 = arith.constant 0 : index
    %c0_75 = arith.constant 0 : index
    %c3_76 = arith.constant 3 : index
    %c0_77 = arith.constant 0 : index
    %c0_78 = arith.constant 0 : index
    %111 = vector.load %arg8[%c0_74, %c0_75, %c3_76, %c0_77, %c0_78] : memref<1x1x7x8x128xf32, #tpu.memory_space<vmem>>, vector<1x1x1x8x128xf32>
    %112 = vector.shape_cast %111 : vector<1x1x1x8x128xf32> to vector<8x128xf32>
    %113 = vector.shape_cast %110 : vector<8x128xf32> to vector<1x1x1x8x128xf32>
    tpu.vector_store %arg8[%c0_74, %c0_75, %c3_76, %c0_77, %c0_78], %113 {strides = array<i32>} : memref<1x1x7x8x128xf32, #tpu.memory_space<vmem>>, vector<1x1x1x8x128xf32>,
    %114 = vector.shape_cast %71 : vector<16x128xf32> to vector<2x8x128xf32>
    %cst_79 = arith.constant dense<0.000000e+00> : vector<8x128xf32>
    %115 = vector.multi_reduction <add>, %114, %cst_79 [0] : vector<2x8x128xf32> to vector<8x128xf32>
    %c0_80 = arith.constant 0 : index
    %c0_81 = arith.constant 0 : index
    %c4 = arith.constant 4 : index
    %c0_82 = arith.constant 0 : index
    %c0_83 = arith.constant 0 : index
    %116 = vector.load %arg8[%c0_80, %c0_81, %c4, %c0_82, %c0_83] : memref<1x1x7x8x128xf32, #tpu.memory_space<vmem>>, vector<1x1x1x8x128xf32>
    %117 = vector.shape_cast %116 : vector<1x1x1x8x128xf32> to vector<8x128xf32>
    %118 = arith.addf %117, %115 : vector<8x128xf32>
    %c0_84 = arith.constant 0 : index
    %c0_85 = arith.constant 0 : index
    %c4_86 = arith.constant 4 : index
    %c0_87 = arith.constant 0 : index
    %c0_88 = arith.constant 0 : index
    %119 = vector.load %arg8[%c0_84, %c0_85, %c4_86, %c0_87, %c0_88] : memref<1x1x7x8x128xf32, #tpu.memory_space<vmem>>, vector<1x1x1x8x128xf32>
    %120 = vector.shape_cast %119 : vector<1x1x1x8x128xf32> to vector<8x128xf32>
    %121 = vector.shape_cast %118 : vector<8x128xf32> to vector<1x1x1x8x128xf32>
    tpu.vector_store %arg8[%c0_84, %c0_85, %c4_86, %c0_87, %c0_88], %121 {strides = array<i32>} : memref<1x1x7x8x128xf32, #tpu.memory_space<vmem>>, vector<1x1x1x8x128xf32>,
    %122 = vector.shape_cast %75 : vector<16x128xf32> to vector<2x8x128xf32>
    %cst_89 = arith.constant dense<0.000000e+00> : vector<8x128xf32>
    %123 = vector.multi_reduction <add>, %122, %cst_89 [0] : vector<2x8x128xf32> to vector<8x128xf32>
    %c0_90 = arith.constant 0 : index
    %c0_91 = arith.constant 0 : index
    %c5 = arith.constant 5 : index
    %c0_92 = arith.constant 0 : index
    %c0_93 = arith.constant 0 : index
    %124 = vector.load %arg8[%c0_90, %c0_91, %c5, %c0_92, %c0_93] : memref<1x1x7x8x128xf32, #tpu.memory_space<vmem>>, vector<1x1x1x8x128xf32>
    %125 = vector.shape_cast %124 : vector<1x1x1x8x128xf32> to vector<8x128xf32>
    %126 = arith.addf %125, %123 : vector<8x128xf32>
    %c0_94 = arith.constant 0 : index
    %c0_95 = arith.constant 0 : index
    %c5_96 = arith.constant 5 : index
    %c0_97 = arith.constant 0 : index
    %c0_98 = arith.constant 0 : index
    %127 = vector.load %arg8[%c0_94, %c0_95, %c5_96, %c0_97, %c0_98] : memref<1x1x7x8x128xf32, #tpu.memory_space<vmem>>, vector<1x1x1x8x128xf32>
    %128 = vector.shape_cast %127 : vector<1x1x1x8x128xf32> to vector<8x128xf32>
    %129 = vector.shape_cast %126 : vector<8x128xf32> to vector<1x1x1x8x128xf32>
    tpu.vector_store %arg8[%c0_94, %c0_95, %c5_96, %c0_97, %c0_98], %129 {strides = array<i32>} : memref<1x1x7x8x128xf32, #tpu.memory_space<vmem>>, vector<1x1x1x8x128xf32>,
    %130 = vector.shape_cast %81 : vector<16x128xf32> to vector<2x8x128xf32>
    %cst_99 = arith.constant dense<0.000000e+00> : vector<8x128xf32>
    %131 = vector.multi_reduction <add>, %130, %cst_99 [0] : vector<2x8x128xf32> to vector<8x128xf32>
    %c0_100 = arith.constant 0 : index
    %c0_101 = arith.constant 0 : index
    %c6 = arith.constant 6 : index
    %c0_102 = arith.constant 0 : index
    %c0_103 = arith.constant 0 : index
    %132 = vector.load %arg8[%c0_100, %c0_101, %c6, %c0_102, %c0_103] : memref<1x1x7x8x128xf32, #tpu.memory_space<vmem>>, vector<1x1x1x8x128xf32>
    %133 = vector.shape_cast %132 : vector<1x1x1x8x128xf32> to vector<8x128xf32>
    %134 = arith.addf %133, %131 : vector<8x128xf32>
    %c0_104 = arith.constant 0 : index
    %c0_105 = arith.constant 0 : index
    %c6_106 = arith.constant 6 : index
    %c0_107 = arith.constant 0 : index
    %c0_108 = arith.constant 0 : index
    %135 = vector.load %arg8[%c0_104, %c0_105, %c6_106, %c0_107, %c0_108] : memref<1x1x7x8x128xf32, #tpu.memory_space<vmem>>, vector<1x1x1x8x128xf32>
    %136 = vector.shape_cast %135 : vector<1x1x1x8x128xf32> to vector<8x128xf32>
    %137 = vector.shape_cast %134 : vector<8x128xf32> to vector<1x1x1x8x128xf32>
    tpu.vector_store %arg8[%c0_104, %c0_105, %c6_106, %c0_107, %c0_108], %137 {strides = array<i32>} : memref<1x1x7x8x128xf32, #tpu.memory_space<vmem>>, vector<1x1x1x8x128xf32>,
    return
  }
  func.func @transform_0(%arg0: i32, %arg1: i32, %arg2: i32) -> (i32, i32, i32, i32) {
    %c4_i32 = arith.constant 4 : i32
    %0 = arith.muli %arg1, %c4_i32 : i32
    %1 = arith.addi %0, %arg2 : i32
    %c0_i32 = arith.constant 0 : i32
    %c0_i32_0 = arith.constant 0 : i32
    %c0_i32_1 = arith.constant 0 : i32
    return %arg0, %c0_i32, %1, %c0_i32_0 : i32, i32, i32, i32
  }
  func.func @transform_1(%arg0: i32, %arg1: i32, %arg2: i32) -> (i32, i32, i32, i32) {
    %c4_i32 = arith.constant 4 : i32
    %0 = arith.muli %arg1, %c4_i32 : i32
    %1 = arith.addi %0, %arg2 : i32
    %c0_i32 = arith.constant 0 : i32
    %c0_i32_0 = arith.constant 0 : i32
    %c0_i32_1 = arith.constant 0 : i32
    return %arg0, %c0_i32, %1, %c0_i32_0 : i32, i32, i32, i32
  }
  func.func @transform_2(%arg0: i32, %arg1: i32, %arg2: i32) -> (i32, i32, i32) {
    %c4_i32 = arith.constant 4 : i32
    %0 = arith.muli %arg1, %c4_i32 : i32
    %1 = arith.addi %0, %arg2 : i32
    %c0_i32 = arith.constant 0 : i32
    %c0_i32_0 = arith.constant 0 : i32
    return %arg0, %1, %c0_i32 : i32, i32, i32
  }
  func.func @transform_3(%arg0: i32, %arg1: i32, %arg2: i32) -> (i32, i32, i32) {
    %c4_i32 = arith.constant 4 : i32
    %0 = arith.muli %arg1, %c4_i32 : i32
    %1 = arith.addi %0, %arg2 : i32
    %c0_i32 = arith.constant 0 : i32
    %c0_i32_0 = arith.constant 0 : i32
    return %arg0, %1, %c0_i32 : i32, i32, i32
  }
  func.func @transform_4(%arg0: i32, %arg1: i32, %arg2: i32) -> (i32, i32, i32) {
    %c4_i32 = arith.constant 4 : i32
    %0 = arith.muli %arg1, %c4_i32 : i32
    %1 = arith.addi %0, %arg2 : i32
    %c0_i32 = arith.constant 0 : i32
    %c0_i32_0 = arith.constant 0 : i32
    return %arg0, %1, %c0_i32 : i32, i32, i32
  }
  func.func @transform_5(%arg0: i32, %arg1: i32, %arg2: i32) -> (i32, i32, i32, i32, i32) {
    %c0_i32 = arith.constant 0 : i32
    %c0_i32_0 = arith.constant 0 : i32
    %c0_i32_1 = arith.constant 0 : i32
    %c0_i32_2 = arith.constant 0 : i32
    return %arg0, %arg1, %c0_i32, %c0_i32_0, %c0_i32_1 : i32, i32, i32, i32, i32
  }
}

</mosaic_0001>

<llo_original>
// kernel: tpu_custom_call.1
$region0: #{tpu_custom_call.1}
  #allocation0 [shape = 'u32[]', space=smem, size = 0x4, offset = 0x4, fixed_abs, tag = 'smem constant byte address 0x4 - core index']
  #allocation1 [shape = 'u32[144,128]{1,0:T(1,128)}', space=vmem, size = 0x12000, scoped, tag = 'internal scratch']
  #allocation12 [shape = 's32[]', space=sflag, size = 0x4, offset = 0, fixed_abs, tag = 'sflag constant byte address 0x0 - dummy sync flag']
  #allocation14 [shape = 's32[]', space=sflag, size = 0x4, offset = 0, fixed_abs, tag = 'sflag constant byte address 0x0 - dummy sync flag']
  %s0 = inlined_call_operand.hbm [shape: bf16[2,4,128,128], index: 0, kind: input, shape index: {}]
  %s1 = inlined_call_operand.hbm [shape: bf16[2,4,128,128], index: 1, kind: input, shape index: {}]
  %s2 = inlined_call_operand.hbm [shape: f32[2,128,128], index: 2, kind: input, shape index: {}]
  %s3 = inlined_call_operand.hbm [shape: s32[2,128,128], index: 3, kind: input, shape index: {}]
  %s4 = inlined_call_operand.hbm [shape: f32[2,128,128], index: 4, kind: input, shape index: {}]
  %s5 = inlined_call_operand.hbm [shape: f32[2,2,7,8,128], index: 5, kind: output, shape index: {}]
  %s6 = sld [smem:[#allocation0]]
  $region77: #{tpu_custom_call.1} parent=0
    _
  %s8 = ssub.s32 1, %s6
  %s9 = scalar_select 0, %s8, %s6
  $region1: #{tpu_custom_call.1} parent=0
    #allocation2 [shape = 'u8[32768]{0}', space=vmem, size = 0x8000, scoped, tag = 'input window, operand 0']
    #allocation3 [shape = 's32[2]{0}', space=sflag, size = 0x8, scoped, tag = 'scoped memory for tpu_custom_call.1']
    #allocation4 [shape = 's32[2]{0}', space=sflag, size = 0x8, scoped, tag = 'scoped memory for tpu_custom_call.1']
    #allocation5 [shape = 'u8[32768]{0}', space=vmem, size = 0x8000, scoped, tag = 'input window, operand 1']
    #allocation6 [shape = 's32[2]{0}', space=sflag, size = 0x8, scoped, tag = 'scoped memory for tpu_custom_call.1']
    #allocation7 [shape = 'u8[16384]{0}', space=vmem, size = 0x4000, scoped, tag = 'input window, operand 2']
    #allocation8 [shape = 'u8[16384]{0}', space=vmem, size = 0x4000, scoped, tag = 'input window, operand 3']
    #allocation9 [shape = 's32[2]{0}', space=sflag, size = 0x8, scoped, tag = 'scoped memory for tpu_custom_call.1']
    #allocation10 [shape = 'u8[16384]{0}', space=vmem, size = 0x4000, scoped, tag = 'input window, operand 4']
    #allocation11 [shape = 'u8[57344]{0}', space=vmem, size = 0xe000, scoped, tag = 'output window, operand 0']
    %10 = vsyncpa [#allocation3], 0
    %s11 = scalar_lea.sflag [#allocation3], 1
    %12 = vsyncpa %s11, 0
    %13 = vsyncpa [#allocation6], 0
    %s14 = scalar_lea.sflag [#allocation6], 1
    %15 = vsyncpa %s14, 0
    %16 = vsyncpa [#allocation9], 0
    %s17 = scalar_lea.sflag [#allocation9], 1
    %18 = vsyncpa %s17, 0
    %19 = vsyncpa [#allocation4], 0
    %s20 = scalar_lea.sflag [#allocation4], 1
    %21 = vsyncpa %s20, 0
    loop: start=0, step=1, limit=18
    $region2: #{tpu_custom_call.1} parent=1 // loop_pre_header
      _
    $region3: #{tpu_custom_call.1} parent=1 // loop_header
      %s23 = sphi 0, %s27
      %p24 = scmp.ge.s32.totalorder %s23, 18
      %s30 = sphi 0, %s49
      %s31 = sphi 0, %s45
      %s32 = sphi 0, %s41
      %s33 = sphi 0, %s30
      %s34 = sphi 0, %s31
      %s35 = sphi 0, %s32
      %s36 = sphi 0, %s33
      %s37 = sphi 0, %s34
      %s38 = sphi 0, %s35
      %s58 = sphi 0, %s60
      %s61 = sphi 0, %s58
      %s62 = sphi 0, %s61
      %s78 = sphi 0, %s62
      %s90 = sphi 0, %s92
      %s93 = sphi 0, %s90
      %s94 = sphi 0, %s93
      %s110 = sphi 0, %s94
      %s122 = sphi 0, %s124
      %s125 = sphi 0, %s122
      %s126 = sphi 0, %s125
      %s142 = sphi 0, %s126
      %s154 = sphi 0, %s156
      %s157 = sphi 0, %s154
      %s158 = sphi 0, %s157
      %s174 = sphi 0, %s158
      %s186 = sphi 0, %s188
      %s189 = sphi 0, %s186
      %s190 = sphi 0, %s189
      %s206 = sphi 0, %s190
      %s214 = sphi 0, %s216
      %s217 = sphi 0, %s214
      %s218 = sphi 0, %s217
      %s234 = sphi 0, %s218
    $region4: #{tpu_custom_call.1} parent=1 // loop_header_branch
      %26 = sbr.rel (%p24) target = $region8
    $region5: #{tpu_custom_call.1} parent=1 // loop_body
      %s28 = ssub.s32 %s23, 1
      %s29 = ssub.s32 %s23, 2
      %s39 = sadd.s32 1, %s32
      %p40 = scmp.ge.s32.totalorder %s39, 4
      %s41 = scalar_select %p40, 0, %s39
      %s42 = sadd.s32 1, %s31
      %s43 = scalar_select %p40, %s42, %s31
      %p44 = scmp.ge.s32.totalorder %s43, 2
      %s45 = scalar_select %p44, 0, %s43
      %s46 = sadd.s32 1, %s30
      %s47 = scalar_select %p44, %s46, %s30
      %p48 = scmp.ge.s32.totalorder %s47, 2
      %s49 = scalar_select %p48, 0, %s47
      %s50 = smul.u32 %s31, 4
      %s51 = sadd.s32 %s50, %s32
      %s52 = smul.u32 %s45, 4
      %s53 = sadd.s32 %s52, %s41
      %s54 = ssub.s32 %s30, %s49
      %s55 = ssub.s32 %s51, %s53
      %s56 = sor.u32 %s54, %s55
      %p57 = scmp.eq.s32.totalorder %s56, 0
      %s59 = sadd.s32 %s58, 1
      %s60 = scalar_select %p57, %s58, %s59
      %p63 = pneg %p57
      %p64 = scmp.eq.s32.totalorder %s23, 15
      %p65 = por %p63, %p64
      %p66 = scmp.ne.s32.totalorder %s58, %s61
      %p67 = scmp.eq.s32.totalorder %s23, 0
      %p68 = por %p66, %p67
      %p69 = scmp.ne.s32.totalorder %s58, %s61
      %p70 = scmp.eq.s32.totalorder %s28, 15
      %p71 = por %p69, %p70
      %p72 = scmp.ne.s32.totalorder %s61, %s62
      %p73 = scmp.eq.s32.totalorder %s28, 0
      %p74 = por %p72, %p73
      %p75 = scmp.ne.s32.totalorder %s61, %s62
      %p76 = scmp.eq.s32.totalorder %s29, 15
      %p77 = por %p75, %p76
      %p79 = scmp.ne.s32.totalorder %s62, %s78
      %p80 = scmp.eq.s32.totalorder %s29, 0
      %p81 = por %p79, %p80
      %s82 = smul.u32 %s31, 4
      %s83 = sadd.s32 %s82, %s32
      %s84 = smul.u32 %s45, 4
      %s85 = sadd.s32 %s84, %s41
      %s86 = ssub.s32 %s30, %s49
      %s87 = ssub.s32 %s83, %s85
      %s88 = sor.u32 %s86, %s87
      %p89 = scmp.eq.s32.totalorder %s88, 0
      %s91 = sadd.s32 %s90, 1
      %s92 = scalar_select %p89, %s90, %s91
      %p95 = pneg %p89
      %p96 = scmp.eq.s32.totalorder %s23, 15
      %p97 = por %p95, %p96
      %p98 = scmp.ne.s32.totalorder %s90, %s93
      %p99 = scmp.eq.s32.totalorder %s23, 0
      %p100 = por %p98, %p99
      %p101 = scmp.ne.s32.totalorder %s90, %s93
      %p102 = scmp.eq.s32.totalorder %s28, 15
      %p103 = por %p101, %p102
      %p104 = scmp.ne.s32.totalorder %s93, %s94
      %p105 = scmp.eq.s32.totalorder %s28, 0
      %p106 = por %p104, %p105
      %p107 = scmp.ne.s32.totalorder %s93, %s94
      %p108 = scmp.eq.s32.totalorder %s29, 15
      %p109 = por %p107, %p108
      %p111 = scmp.ne.s32.totalorder %s94, %s110
      %p112 = scmp.eq.s32.totalorder %s29, 0
      %p113 = por %p111, %p112
      %s114 = smul.u32 %s31, 4
      %s115 = sadd.s32 %s114, %s32
      %s116 = smul.u32 %s45, 4
      %s117 = sadd.s32 %s116, %s41
      %s118 = ssub.s32 %s30, %s49
      %s119 = ssub.s32 %s115, %s117
      %s120 = sor.u32 %s118, %s119
      %p121 = scmp.eq.s32.totalorder %s120, 0
      %s123 = sadd.s32 %s122, 1
      %s124 = scalar_select %p121, %s122, %s123
      %p127 = pneg %p121
      %p128 = scmp.eq.s32.totalorder %s23, 15
      %p129 = por %p127, %p128
      %p130 = scmp.ne.s32.totalorder %s122, %s125
      %p131 = scmp.eq.s32.totalorder %s23, 0
      %p132 = por %p130, %p131
      %p133 = scmp.ne.s32.totalorder %s122, %s125
      %p134 = scmp.eq.s32.totalorder %s28, 15
      %p135 = por %p133, %p134
      %p136 = scmp.ne.s32.totalorder %s125, %s126
      %p137 = scmp.eq.s32.totalorder %s28, 0
      %p138 = por %p136, %p137
      %p139 = scmp.ne.s32.totalorder %s125, %s126
      %p140 = scmp.eq.s32.totalorder %s29, 15
      %p141 = por %p139, %p140
      %p143 = scmp.ne.s32.totalorder %s126, %s142
      %p144 = scmp.eq.s32.totalorder %s29, 0
      %p145 = por %p143, %p144
      %s146 = smul.u32 %s31, 4
      %s147 = sadd.s32 %s146, %s32
      %s148 = smul.u32 %s45, 4
      %s149 = sadd.s32 %s148, %s41
      %s150 = ssub.s32 %s30, %s49
      %s151 = ssub.s32 %s147, %s149
      %s152 = sor.u32 %s150, %s151
      %p153 = scmp.eq.s32.totalorder %s152, 0
      %s155 = sadd.s32 %s154, 1
      %s156 = scalar_select %p153, %s154, %s155
      %p159 = pneg %p153
      %p160 = scmp.eq.s32.totalorder %s23, 15
      %p161 = por %p159, %p160
      %p162 = scmp.ne.s32.totalorder %s154, %s157
      %p163 = scmp.eq.s32.totalorder %s23, 0
      %p164 = por %p162, %p163
      %p165 = scmp.ne.s32.totalorder %s154, %s157
      %p166 = scmp.eq.s32.totalorder %s28, 15
      %p167 = por %p165, %p166
      %p168 = scmp.ne.s32.totalorder %s157, %s158
      %p169 = scmp.eq.s32.totalorder %s28, 0
      %p170 = por %p168, %p169
      %p171 = scmp.ne.s32.totalorder %s157, %s158
      %p172 = scmp.eq.s32.totalorder %s29, 15
      %p173 = por %p171, %p172
      %p175 = scmp.ne.s32.totalorder %s158, %s174
      %p176 = scmp.eq.s32.totalorder %s29, 0
      %p177 = por %p175, %p176
      %s178 = smul.u32 %s31, 4
      %s179 = sadd.s32 %s178, %s32
      %s180 = smul.u32 %s45, 4
      %s181 = sadd.s32 %s180, %s41
      %s182 = ssub.s32 %s30, %s49
      %s183 = ssub.s32 %s179, %s181
      %s184 = sor.u32 %s182, %s183
      %p185 = scmp.eq.s32.totalorder %s184, 0
      %s187 = sadd.s32 %s186, 1
      %s188 = scalar_select %p185, %s186, %s187
      %p191 = pneg %p185
      %p192 = scmp.eq.s32.totalorder %s23, 15
      %p193 = por %p191, %p192
      %p194 = scmp.ne.s32.totalorder %s186, %s189
      %p195 = scmp.eq.s32.totalorder %s23, 0
      %p196 = por %p194, %p195
      %p197 = scmp.ne.s32.totalorder %s186, %s189
      %p198 = scmp.eq.s32.totalorder %s28, 15
      %p199 = por %p197, %p198
      %p200 = scmp.ne.s32.totalorder %s189, %s190
      %p201 = scmp.eq.s32.totalorder %s28, 0
      %p202 = por %p200, %p201
      %p203 = scmp.ne.s32.totalorder %s189, %s190
      %p204 = scmp.eq.s32.totalorder %s29, 15
      %p205 = por %p203, %p204
      %p207 = scmp.ne.s32.totalorder %s190, %s206
      %p208 = scmp.eq.s32.totalorder %s29, 0
      %p209 = por %p207, %p208
      %s210 = ssub.s32 %s30, %s49
      %s211 = ssub.s32 %s31, %s45
      %s212 = sor.u32 %s210, %s211
      %p213 = scmp.eq.s32.totalorder %s212, 0
      %s215 = sadd.s32 %s214, 1
      %s216 = scalar_select %p213, %s214, %s215
      %p219 = pneg %p213
      %p220 = scmp.eq.s32.totalorder %s23, 15
      %p221 = por %p219, %p220
      %p222 = scmp.ne.s32.totalorder %s214, %s217
      %p223 = scmp.eq.s32.totalorder %s23, 0
      %p224 = por %p222, %p223
      %p225 = scmp.ne.s32.totalorder %s214, %s217
      %p226 = scmp.eq.s32.totalorder %s28, 15
      %p227 = por %p225, %p226
      %p228 = scmp.ne.s32.totalorder %s217, %s218
      %p229 = scmp.eq.s32.totalorder %s28, 0
      %p230 = por %p228, %p229
      %p231 = scmp.ne.s32.totalorder %s217, %s218
      %p232 = scmp.eq.s32.totalorder %s29, 15
      %p233 = por %p231, %p232
      %p235 = scmp.ne.s32.totalorder %s218, %s234
      %p236 = scmp.eq.s32.totalorder %s29, 0
      %p237 = por %p235, %p236
      %p238 = scmp.le.s32.totalorder 1, %s23
      %p239 = scmp.lt.s32.totalorder %s23, 17
      %p240 = pnand %p238, %p239
      %p241 = pneg %p240
      // Predicated region
      $region9: #{tpu_custom_call.1} parent=5 // pred_check
        _
      $region10: #{tpu_custom_call.1} parent=5 // pred_check_branch
        %243 = sbr.rel (%p240) target = $region12
      $region11: #{tpu_custom_call.1} parent=5 // pred_region
        %s244 = ssub.s32 %s23, 1
      $region12: #{tpu_custom_call.1} parent=5 // pred_fallthru
        _
      %p245 = scmp.lt.s32.totalorder %s23, 16
      // Predicated region
      $region13: #{tpu_custom_call.1} parent=5 // pred_check
        %p246 = pneg %p245
      $region14: #{tpu_custom_call.1} parent=5 // pred_check_branch
        %248 = sbr.rel (%p246) target = $region16
      $region15: #{tpu_custom_call.1} parent=5 // pred_region
        // Predicated region
        $region17: #{tpu_custom_call.1} parent=15 // pred_check
          %p249 = pneg %p68
        $region18: #{tpu_custom_call.1} parent=15 // pred_check_branch
          %251 = sbr.rel (%p249) target = $region20
        $region19: #{tpu_custom_call.1} parent=15 // pred_region
          #allocation13 [shape = 'u32[6]{0}', space=smem, size = 0x18, scoped, tag = 'DMA stride descriptor']
          %s252 = sand.u32 %s58, 1
          %s253 = scalar_lea.sflag [#allocation3], %s252
          %s254 = sand.u32 %s58, 1
          %s255 = smul.addr %s254, 32
          %s256 = scalar_lea.vmem [#allocation2], %s255
          %s257 = smul.u32 %s31, 4
          %s258 = sadd.s32 %s257, %s32
          %s259 = smul.u32 2, %s258
          %s261 = ssub.s32 512, 512
          %262 = vsyncadd %s253, %s261
          %s263 = smul.addr %s30, 64
          %s264 = sadd.s32 %s259, %s263
          %s265 = smul.addr %s264, 64
          %s266 = scalar_lea.hbm %s0, %s265
          %s268 = sshll.u32 1, 14
          %s269 = sxor.u32 4294967295, %s268
          %s271 = sld [smem:[#allocation0]]
          %s272 = sadd.s32 2, %s271
          %s274 = sshll.u32 7, 26
          %s275 = sxor.u32 4294967295, %s274
          %s276 = sand.u32 0, %s275
          %s277 = sshll.u32 %s272, 26
          %s278 = sor.u32 %s276, %s277
          %s279 = sshll.u32 %s256, 4
          %s280 = int_to_ptr.vmem [resolvable:$true] %s279
          %286 = sst [smem:[#allocation13]] 1024
          %s287 = scalar_lea.smem [#allocation13], 1
          %288 = sst [smem:[%s287]] 128
          %s289 = scalar_lea.smem [#allocation13], 2
          %290 = sst [smem:[%s289]] 2
          %s291 = scalar_lea.smem [#allocation13], 3
          %292 = sst [smem:[%s291]] 64
          %s293 = scalar_lea.smem [#allocation13], 4
          %294 = sst [smem:[%s293]] 64
          %s295 = scalar_lea.smem [#allocation13], 5
          %296 = sst [smem:[%s295]] 4
          %298 = dma.general %s266, 512, %s280, %s253, [#allocation12], [#allocation13], %s278, 0
        $region20: #{tpu_custom_call.1} parent=15 // pred_fallthru
          _
        // Predicated region
        $region21: #{tpu_custom_call.1} parent=15 // pred_check
          %p299 = pneg %p100
        $region22: #{tpu_custom_call.1} parent=15 // pred_check_branch
          %301 = sbr.rel (%p299) target = $region24
        $region23: #{tpu_custom_call.1} parent=15 // pred_region
          #allocation15 [shape = 'u32[6]{0}', space=smem, size = 0x18, scoped, tag = 'DMA stride descriptor']
          %s302 = sand.u32 %s23, 1
          %s303 = scalar_lea.sflag [#allocation6], %s302
          %s304 = sand.u32 %s90, 1
          %s305 = smul.addr %s304, 32
          %s306 = scalar_lea.vmem [#allocation5], %s305
          %s307 = smul.u32 %s31, 4
          %s308 = sadd.s32 %s307, %s32
          %s309 = smul.u32 2, %s308
          %s311 = ssub.s32 512, 512
          %312 = vsyncadd %s303, %s311
          %s313 = smul.addr %s30, 64
          %s314 = sadd.s32 %s309, %s313
          %s315 = smul.addr %s314, 64
          %s316 = scalar_lea.hbm %s1, %s315
          %s318 = sshll.u32 1, 14
          %s319 = sxor.u32 4294967295, %s318
          %s321 = sld [smem:[#allocation0]]
          %s322 = sadd.s32 2, %s321
          %s324 = sshll.u32 7, 26
          %s325 = sxor.u32 4294967295, %s324
          %s326 = sand.u32 0, %s325
          %s327 = sshll.u32 %s322, 26
          %s328 = sor.u32 %s326, %s327
          %s329 = sshll.u32 %s306, 4
          %s330 = int_to_ptr.vmem [resolvable:$true] %s329
          %336 = sst [smem:[#allocation15]] 1024
          %s337 = scalar_lea.smem [#allocation15], 1
          %338 = sst [smem:[%s337]] 128
          %s339 = scalar_lea.smem [#allocation15], 2
          %340 = sst [smem:[%s339]] 2
          %s341 = scalar_lea.smem [#allocation15], 3
          %342 = sst [smem:[%s341]] 64
          %s343 = scalar_lea.smem [#allocation15], 4
          %344 = sst [smem:[%s343]] 64
          %s345 = scalar_lea.smem [#allocation15], 5
          %346 = sst [smem:[%s345]] 4
          %348 = dma.general %s316, 512, %s330, %s303, [#allocation14], [#allocation15], %s328, 0
        $region24: #{tpu_custom_call.1} parent=15 // pred_fallthru
          _
        // Predicated region
        $region25: #{tpu_custom_call.1} parent=15 // pred_check
          %p349 = pneg %p132
        $region26: #{tpu_custom_call.1} parent=15 // pred_check_branch
          %351 = sbr.rel (%p349) target = $region28
        $region27: #{tpu_custom_call.1} parent=15 // pred_region
          %s352 = sand.u32 %s23, 1
          %s353 = scalar_lea.sflag [#allocation6], %s352
          %s354 = sand.u32 %s122, 1
          %s355 = smul.addr %s354, 16
          %s356 = scalar_lea.vmem [#allocation7], %s355
          %s357 = smul.u32 %s31, 4
          %s358 = sadd.s32 %s357, %s32
          %s359 = smul.u32 2, %s358
          %s361 = ssub.s32 256, 256
          %362 = vsyncadd %s353, %s361
          %s363 = smul.addr %s30, 16
          %s364 = sadd.s32 %s359, %s363
          %s365 = smul.addr %s364, 128
          %s366 = scalar_lea.hbm %s2, %s365
          %s367 = sshll.u32 %s356, 4
          %s368 = int_to_ptr.vmem [resolvable:$true] %s367
          %373 = dma.hbm_to_vmem [thread:$0]  %s366, 256, %s368, %s353, 128, 128, 8
        $region28: #{tpu_custom_call.1} parent=15 // pred_fallthru
          _
        // Predicated region
        $region29: #{tpu_custom_call.1} parent=15 // pred_check
          %p374 = pneg %p164
        $region30: #{tpu_custom_call.1} parent=15 // pred_check_branch
          %376 = sbr.rel (%p374) target = $region32
        $region31: #{tpu_custom_call.1} parent=15 // pred_region
          %s377 = sand.u32 %s23, 1
          %s378 = scalar_lea.sflag [#allocation9], %s377
          %s379 = sand.u32 %s154, 1
          %s380 = smul.addr %s379, 16
          %s381 = scalar_lea.vmem [#allocation8], %s380
          %s382 = smul.u32 %s31, 4
          %s383 = sadd.s32 %s382, %s32
          %s384 = smul.u32 2, %s383
          %s386 = ssub.s32 256, 256
          %387 = vsyncadd %s378, %s386
          %s388 = smul.addr %s30, 16
          %s389 = sadd.s32 %s384, %s388
          %s390 = smul.addr %s389, 128
          %s391 = scalar_lea.hbm %s3, %s390
          %s392 = sshll.u32 %s381, 4
          %s393 = int_to_ptr.vmem [resolvable:$true] %s392
          %398 = dma.hbm_to_vmem [thread:$0]  %s391, 256, %s393, %s378, 128, 128, 8
        $region32: #{tpu_custom_call.1} parent=15 // pred_fallthru
          _
        // Predicated region
        $region33: #{tpu_custom_call.1} parent=15 // pred_check
          %p399 = pneg %p196
        $region34: #{tpu_custom_call.1} parent=15 // pred_check_branch
          %401 = sbr.rel (%p399) target = $region36
        $region35: #{tpu_custom_call.1} parent=15 // pred_region
          %s402 = sand.u32 %s23, 1
          %s403 = scalar_lea.sflag [#allocation9], %s402
          %s404 = sand.u32 %s186, 1
          %s405 = smul.addr %s404, 16
          %s406 = scalar_lea.vmem [#allocation10], %s405
          %s407 = smul.u32 %s31, 4
          %s408 = sadd.s32 %s407, %s32
          %s409 = smul.u32 2, %s408
          %s411 = ssub.s32 256, 256
          %412 = vsyncadd %s403, %s411
          %s413 = smul.addr %s30, 16
          %s414 = sadd.s32 %s409, %s413
          %s415 = smul.addr %s414, 128
          %s416 = scalar_lea.hbm %s4, %s415
          %s417 = sshll.u32 %s406, 4
          %s418 = int_to_ptr.vmem [resolvable:$true] %s417
          %423 = dma.hbm_to_vmem [thread:$0]  %s416, 256, %s418, %s403, 128, 128, 8
        $region36: #{tpu_custom_call.1} parent=15 // pred_fallthru
          _
      $region16: #{tpu_custom_call.1} parent=5 // pred_fallthru
        _
      %p424 = scmp.le.s32.totalorder 1, %s23
      %p425 = scmp.lt.s32.totalorder %s23, 17
      %p426 = pnand %p424, %p425
      %p427 = pneg %p426
      // Predicated region
      $region37: #{tpu_custom_call.1} parent=5 // pred_check
        _
      $region38: #{tpu_custom_call.1} parent=5 // pred_check_branch
        %429 = sbr.rel (%p426) target = $region40
      $region39: #{tpu_custom_call.1} parent=5 // pred_region
        %s430 = ssub.s32 %s23, 1
        %s431 = sand.u32 %s61, 1
        %s432 = scalar_lea.sflag [#allocation3], %s431
        %s433 = sand.u32 %s61, 1
        %s434 = smul.addr %s433, 32
        %s435 = scalar_lea.vmem [#allocation2], %s434
        // Predicated region
        $region41: #{tpu_custom_call.1} parent=39 // pred_check
          %p436 = pneg %p74
        $region42: #{tpu_custom_call.1} parent=39 // pred_check_branch
          %438 = sbr.rel (%p436) target = $region44
        $region43: #{tpu_custom_call.1} parent=39 // pred_region
          %439 = dma.done %s432, 512
        $region44: #{tpu_custom_call.1} parent=39 // pred_fallthru
          _
        %s440 = sand.u32 %s28, 1
        %s441 = scalar_lea.sflag [#allocation6], %s440
        %s442 = sand.u32 %s93, 1
        %s443 = smul.addr %s442, 32
        %s444 = scalar_lea.vmem [#allocation5], %s443
        // Predicated region
        $region45: #{tpu_custom_call.1} parent=39 // pred_check
          %p445 = pneg %p106
        $region46: #{tpu_custom_call.1} parent=39 // pred_check_branch
          %447 = sbr.rel (%p445) target = $region48
        $region47: #{tpu_custom_call.1} parent=39 // pred_region
          %448 = dma.done %s441, 512
        $region48: #{tpu_custom_call.1} parent=39 // pred_fallthru
          _
        %s449 = sand.u32 %s28, 1
        %s450 = scalar_lea.sflag [#allocation6], %s449
        %s451 = sand.u32 %s125, 1
        %s452 = smul.addr %s451, 16
        %s453 = scalar_lea.vmem [#allocation7], %s452
        // Predicated region
        $region49: #{tpu_custom_call.1} parent=39 // pred_check
          %p454 = pneg %p138
        $region50: #{tpu_custom_call.1} parent=39 // pred_check_branch
          %456 = sbr.rel (%p454) target = $region52
        $region51: #{tpu_custom_call.1} parent=39 // pred_region
          %457 = dma.done %s450, 256
        $region52: #{tpu_custom_call.1} parent=39 // pred_fallthru
          _
        %s458 = sand.u32 %s28, 1
        %s459 = scalar_lea.sflag [#allocation9], %s458
        %s460 = sand.u32 %s157, 1
        %s461 = smul.addr %s460, 16
        %s462 = scalar_lea.vmem [#allocation8], %s461
        // Predicated region
        $region53: #{tpu_custom_call.1} parent=39 // pred_check
          %p463 = pneg %p170
        $region54: #{tpu_custom_call.1} parent=39 // pred_check_branch
          %465 = sbr.rel (%p463) target = $region56
        $region55: #{tpu_custom_call.1} parent=39 // pred_region
          %466 = dma.done %s459, 256
        $region56: #{tpu_custom_call.1} parent=39 // pred_fallthru
          _
        %s467 = sand.u32 %s28, 1
        %s468 = scalar_lea.sflag [#allocation9], %s467
        %s469 = sand.u32 %s189, 1
        %s470 = smul.addr %s469, 16
        %s471 = scalar_lea.vmem [#allocation10], %s470
        // Predicated region
        $region57: #{tpu_custom_call.1} parent=39 // pred_check
          %p472 = pneg %p202
        $region58: #{tpu_custom_call.1} parent=39 // pred_check_branch
          %474 = sbr.rel (%p472) target = $region60
        $region59: #{tpu_custom_call.1} parent=39 // pred_region
          %475 = dma.done %s468, 256
        $region60: #{tpu_custom_call.1} parent=39 // pred_fallthru
          _
        %s476 = sand.u32 %s61, 1
        %s477 = scalar_lea.sflag [#allocation3], %s476
        %s478 = sand.u32 %s61, 1
        %s479 = smul.addr %s478, 32
        %s480 = scalar_lea.vmem [#allocation2], %s479
        %p481 = pneg %p74
        %p482 = pneg %p71
        %s483 = sand.u32 %s28, 1
        %s484 = scalar_lea.sflag [#allocation6], %s483
        %s485 = sand.u32 %s93, 1
        %s486 = smul.addr %s485, 32
        %s487 = scalar_lea.vmem [#allocation5], %s486
        %p488 = pneg %p106
        %p489 = pneg %p103
        %s490 = sand.u32 %s28, 1
        %s491 = scalar_lea.sflag [#allocation6], %s490
        %s492 = sand.u32 %s125, 1
        %s493 = smul.addr %s492, 16
        %s494 = scalar_lea.vmem [#allocation7], %s493
        %p495 = pneg %p138
        %p496 = pneg %p135
        %s497 = sand.u32 %s28, 1
        %s498 = scalar_lea.sflag [#allocation9], %s497
        %s499 = sand.u32 %s157, 1
        %s500 = smul.addr %s499, 16
        %s501 = scalar_lea.vmem [#allocation8], %s500
        %p502 = pneg %p170
        %p503 = pneg %p167
        %s504 = sand.u32 %s28, 1
        %s505 = scalar_lea.sflag [#allocation9], %s504
        %s506 = sand.u32 %s189, 1
        %s507 = smul.addr %s506, 16
        %s508 = scalar_lea.vmem [#allocation10], %s507
        %p509 = pneg %p202
        %p510 = pneg %p199
        %p511 = pneg %p230
        %p512 = pneg %p227
        %s513 = sand.u32 %s217, 1
        %s514 = scalar_lea.sflag [#allocation4], %s513
        %s515 = sand.u32 %s217, 1
        %s516 = smul.addr %s515, 56
        %s517 = scalar_lea.vmem [#allocation11], %s516
        %s518 = smul.u32 %s34, 4
        %s519 = sadd.s32 %s518, %s35
        %s520 = smul.u32 2, %s519
        %s521 = smul.u32 %s34, 4
        %s522 = sadd.s32 %s521, %s35
        %s523 = smul.u32 2, %s522
        %s524 = smul.u32 %s34, 4
        %s525 = sadd.s32 %s524, %s35
        %s526 = smul.u32 2, %s525
        %s527 = smul.u32 %s34, 4
        %s528 = sadd.s32 %s527, %s35
        %s529 = smul.u32 2, %s528
        %s530 = smul.u32 %s34, 4
        %s531 = sadd.s32 %s530, %s35
        %s532 = smul.u32 2, %s531
        %p533 = scmp.eq.s32.totalorder %s35, 0
        // Predicated region
        $region61: #{tpu_custom_call.1} parent=39 // pred_check
          %p534 = pneg %p533
        $region62: #{tpu_custom_call.1} parent=39 // pred_check_branch
          %536 = sbr.rel (%p534) target = $region64
        $region63: #{tpu_custom_call.1} parent=39 // pred_region
          %537 = vst [vmem:[%s517] sm:$0xff] 0.0
          %538 = vst [vmem:[%s517 + $0x8] sm:$0xff] 0.0
          %539 = vst [vmem:[%s517 + $0x10] sm:$0xff] 0.0
          %540 = vst [vmem:[%s517 + $0x18] sm:$0xff] 0.0
          %541 = vst [vmem:[%s517 + $0x20] sm:$0xff] 0.0
          %542 = vst [vmem:[%s517 + $0x28] sm:$0xff] 0.0
          %543 = vst [vmem:[%s517 + $0x30] sm:$0xff] 0.0
        $region64: #{tpu_custom_call.1} parent=39 // pred_fallthru
          _
        %v544 = vld [vmem:[%s435] sm:$0xf]
        %v545 = vld [vmem:[%s435 + $0x4] sm:$0xf]
        %v546 = vld [vmem:[%s435 + $0x8] sm:$0xf]
        %v547 = vld [vmem:[%s435 + $0xc] sm:$0xf]
        %v548 = vld [vmem:[%s435 + $0x10] sm:$0xf]
        %v549 = vld [vmem:[%s435 + $0x14] sm:$0xf]
        %v550 = vld [vmem:[%s435 + $0x18] sm:$0xf]
        %v551 = vld [vmem:[%s435 + $0x1c] sm:$0xf]
        %v552 = vunpack.c.l.bf16 %v544
        %v553 = vunpack.c.l.bf16 %v545
        %v554 = vunpack.c.l.bf16 %v546
        %v555 = vunpack.c.l.bf16 %v547
        %v556 = vunpack.c.l.bf16 %v548
        %v557 = vunpack.c.l.bf16 %v549
        %v558 = vunpack.c.l.bf16 %v550
        %v559 = vunpack.c.l.bf16 %v551
        %v560 = vld [vmem:[%s444] sm:$0xf]
        %v561 = vld [vmem:[%s444 + $0x4] sm:$0xf]
        %v562 = vld [vmem:[%s444 + $0x8] sm:$0xf]
        %v563 = vld [vmem:[%s444 + $0xc] sm:$0xf]
        %v564 = vld [vmem:[%s444 + $0x10] sm:$0xf]
        %v565 = vld [vmem:[%s444 + $0x14] sm:$0xf]
        %v566 = vld [vmem:[%s444 + $0x18] sm:$0xf]
        %v567 = vld [vmem:[%s444 + $0x1c] sm:$0xf]
        %v568 = vunpack.c.l.bf16 %v560
        %v569 = vunpack.c.l.bf16 %v561
        %v570 = vunpack.c.l.bf16 %v562
        %v571 = vunpack.c.l.bf16 %v563
        %v572 = vunpack.c.l.bf16 %v564
        %v573 = vunpack.c.l.bf16 %v565
        %v574 = vunpack.c.l.bf16 %v566
        %v575 = vunpack.c.l.bf16 %v567
        %v576 = vld [vmem:[%s453] sm:$0xff]
        %v577 = vld [vmem:[%s453 + $0x8] sm:$0xff]
        %v578 = vld [vmem:[%s462] sm:$0xff]
        %v579 = vld [vmem:[%s462 + $0x8] sm:$0xff]
        %v580 = vld [vmem:[%s471] sm:$0xff]
        %v581 = vld [vmem:[%s471 + $0x8] sm:$0xff]
        %vm582 = vcmp.eq.s32.totalorder %v578, 0
        %vm583 = vcmp.eq.s32.totalorder %v579, 0
        %vm584 = vcmp.eq.s32.totalorder %v578, 1
        %vm585 = vcmp.eq.s32.totalorder %v579, 1
        %vm586 = vcmp.eq.s32.totalorder %v578, 2
        %vm587 = vcmp.eq.s32.totalorder %v579, 2
        %vm588 = vcmp.eq.s32.totalorder %v578, 3
        %vm589 = vcmp.eq.s32.totalorder %v579, 3
        %v590 = vmax.f32 %v552, %v556
        %v591 = vmax.f32 %v554, %v558
        %v592 = vmax.f32 %v590, %v591
        %v593 = vmax.f32 %v553, %v557
        %v594 = vmax.f32 %v555, %v559
        %v595 = vmax.f32 %v593, %v594
        %v596 = vmax.f32 %v568, %v572
        %v597 = vmax.f32 %v570, %v574
        %v598 = vmax.f32 %v596, %v597
        %v599 = vmax.f32 %v569, %v573
        %v600 = vmax.f32 %v571, %v575
        %v601 = vmax.f32 %v599, %v600
        %v602 = vsub.f32 %v552, %v592
        %v603 = vsub.f32 %v553, %v595
        %v604 = vsub.f32 %v554, %v592
        %v605 = vsub.f32 %v555, %v595
        %v606 = vsub.f32 %v556, %v592
        %v607 = vsub.f32 %v557, %v595
        %v608 = vsub.f32 %v558, %v592
        %v609 = vsub.f32 %v559, %v595
        %v610 = vmul.f32 %v602, 1.442695
        %v611 = vpow.pop %v610
        %v612 = vmul.f32 %v603, 1.442695
        %v613 = vpow.pop %v612
        %v614 = vmul.f32 %v604, 1.442695
        %v615 = vpow.pop %v614
        %v616 = vmul.f32 %v605, 1.442695
        %v617 = vpow.pop %v616
        %v618 = vmul.f32 %v606, 1.442695
        %v619 = vpow.pop %v618
        %v620 = vmul.f32 %v607, 1.442695
        %v621 = vpow.pop %v620
        %v622 = vmul.f32 %v608, 1.442695
        %v623 = vpow.pop %v622
        %v624 = vmul.f32 %v609, 1.442695
        %v625 = vpow.pop %v624
        %v626 = vadd.f32 %v611, %v615
        %v627 = vadd.f32 %v626, %v619
        %v628 = vadd.f32 %v627, %v623
        %v629 = vadd.f32 %v613, %v617
        %v630 = vadd.f32 %v629, %v621
        %v631 = vadd.f32 %v630, %v625
        %v632 = vlog2.pop %v628
        %v633 = vmul.f32 %v632, 0.6931472
        %v634 = vlog2.pop %v631
        %v635 = vmul.f32 %v634, 0.6931472
        %v636 = vadd.f32 %v592, %v633
        %v637 = vadd.f32 %v595, %v635
        %v638 = vsub.f32 %v568, %v598
        %v639 = vsub.f32 %v569, %v601
        %v640 = vsub.f32 %v570, %v598
        %v641 = vsub.f32 %v571, %v601
        %v642 = vsub.f32 %v572, %v598
        %v643 = vsub.f32 %v573, %v601
        %v644 = vsub.f32 %v574, %v598
        %v645 = vsub.f32 %v575, %v601
        %v646 = vmul.f32 %v638, 1.442695
        %v647 = vpow.pop %v646
        %v648 = vmul.f32 %v639, 1.442695
        %v649 = vpow.pop %v648
        %v650 = vmul.f32 %v640, 1.442695
        %v651 = vpow.pop %v650
        %v652 = vmul.f32 %v641, 1.442695
        %v653 = vpow.pop %v652
        %v654 = vmul.f32 %v642, 1.442695
        %v655 = vpow.pop %v654
        %v656 = vmul.f32 %v643, 1.442695
        %v657 = vpow.pop %v656
        %v658 = vmul.f32 %v644, 1.442695
        %v659 = vpow.pop %v658
        %v660 = vmul.f32 %v645, 1.442695
        %v661 = vpow.pop %v660
        %v662 = vadd.f32 %v647, %v651
        %v663 = vadd.f32 %v662, %v655
        %v664 = vadd.f32 %v663, %v659
        %v665 = vadd.f32 %v649, %v653
        %v666 = vadd.f32 %v665, %v657
        %v667 = vadd.f32 %v666, %v661
        %v668 = vlog2.pop %v664
        %v669 = vmul.f32 %v668, 0.6931472
        %v670 = vlog2.pop %v667
        %v671 = vmul.f32 %v670, 0.6931472
        %v672 = vadd.f32 %v598, %v669
        %v673 = vadd.f32 %v601, %v671
        %v674 = vsel %vm582, %v552, 0.0
        %v675 = vsel %vm583, %v553, 0.0
        %v676 = vsel %vm584, %v554, 0.0
        %v677 = vsel %vm585, %v555, 0.0
        %v678 = vsel %vm586, %v556, 0.0
        %v679 = vsel %vm587, %v557, 0.0
        %v680 = vsel %vm588, %v558, 0.0
        %v681 = vsel %vm589, %v559, 0.0
        %v682 = vadd.f32 %v674, %v676
        %v683 = vadd.f32 %v682, %v678
        %v684 = vadd.f32 %v683, %v680
        %v685 = vadd.f32 %v675, %v677
        %v686 = vadd.f32 %v685, %v679
        %v687 = vadd.f32 %v686, %v681
        %v688 = vsel %vm582, %v568, 0.0
        %v689 = vsel %vm583, %v569, 0.0
        %v690 = vsel %vm584, %v570, 0.0
        %v691 = vsel %vm585, %v571, 0.0
        %v692 = vsel %vm586, %v572, 0.0
        %v693 = vsel %vm587, %v573, 0.0
        %v694 = vsel %vm588, %v574, 0.0
        %v695 = vsel %vm589, %v575, 0.0
        %v696 = vadd.f32 %v688, %v690
        %v697 = vadd.f32 %v696, %v692
        %v698 = vadd.f32 %v697, %v694
        %v699 = vadd.f32 %v689, %v691
        %v700 = vadd.f32 %v699, %v693
        %v701 = vadd.f32 %v700, %v695
        %vm702 = vcmp.ge.s32.totalorder %v578, 0
        %vm703 = vcmp.ge.s32.totalorder %v579, 0
        %vm704 = vcmp.lt.s32.totalorder %v578, 4
        %vm705 = vcmp.lt.s32.totalorder %v579, 4
        %vm706 = vmand %vm702, %vm704
        %vm707 = vmand %vm703, %vm705
        %v708 = vsub.f32 %v636, %v684
        %v709 = vsub.f32 %v637, %v687
        %v710 = vsel %vm706, %v708, 0.0
        %v711 = vsel %vm707, %v709, 0.0
        %v712 = vsub.f32 %v672, %v698
        %v713 = vsub.f32 %v673, %v701
        %v714 = vsel %vm706, %v712, 0.0
        %v715 = vsel %vm707, %v713, 0.0
        %vm716 = vcmp.ge.f32.partialorder %v698, %v598
        %vm717 = vcmp.ge.f32.partialorder %v701, %v601
        %vm718 = vmand %vm706, %vm716
        %vm719 = vmand %vm707, %vm717
        %v720 = vsel %vm718, 1.0, 0.0
        %v721 = vsel %vm719, 1.0, 0.0
        %v722 = vsel %vm702, 1.0, 0.0
        %v723 = vsel %vm703, 1.0, 0.0
        %v724 = vmax.f32 %v576, 0.0
        %v725 = vmax.f32 %v577, 0.0
        %v726 = vmul.f32 %v576, %v580
        %v727 = vmul.f32 %v577, %v581
        %v728 = vsub.f32 %v724, %v726
        %v729 = vsub.f32 %v725, %v727
        %v730 = vand.u32 2147483647, %v576
        %v731 = vand.u32 2147483647, %v577
        %v732 = vsub.f32 0.0, %v730
        %v733 = vsub.f32 0.0, %v731
        %v734 = vmul.f32 %v732, 1.442695
        %v735 = vpow.pop %v734
        %v736 = vmul.f32 %v733, 1.442695
        %v737 = vpow.pop %v736
        %v738 = vadd.f32 %v735, 1.0
        %v739 = vlog2.pop %v738
        %v740 = vmul.f32 %v739, 0.6931472
        %v741 = vmul.f32 -0.5, %v735
        %v742 = vadd.f32 %v741, 1.0
        %v743 = vmul.f32 %v742, %v735
        %v744 = vand.u32 2147483647, %v735
        %vm745 = vcmp.lt.f32.partialorder %v744, 0.0004427343
        %v746 = vsel %vm745, %v743, %v740
        %v747 = vadd.f32 %v737, 1.0
        %v748 = vlog2.pop %v747
        %v749 = vmul.f32 %v748, 0.6931472
        %v750 = vmul.f32 -0.5, %v737
        %v751 = vadd.f32 %v750, 1.0
        %v752 = vmul.f32 %v751, %v737
        %v753 = vand.u32 2147483647, %v737
        %vm754 = vcmp.lt.f32.partialorder %v753, 0.0004427343
        %v755 = vsel %vm754, %v752, %v749
        %v756 = vadd.f32 %v728, %v746
        %v757 = vadd.f32 %v729, %v755
        %vm758 = vcmp.gt.f32.partialorder %v576, 1.3862944
        %vm759 = vcmp.gt.f32.partialorder %v577, 1.3862944
        %v760 = vsel %vm758, %v714, 0.0
        %v761 = vsel %vm759, %v715, 0.0
        %vm762 = vcmp.ne.s32.totalorder %v578, 255
        %vm763 = vcmp.ne.s32.totalorder %v579, 255
        %vm764 = vmand %vm758, %vm762
        %vm765 = vmand %vm759, %vm763
        %v766 = vsel %vm764, 1.0, 0.0
        %v767 = vsel %vm765, 1.0, 0.0
        %v768 = vadd.f32 %v720, %v721
        %v769 = vld [vmem:[%s517] sm:$0xff]
        %v770 = vadd.f32 %v769, %v768
        %771 = vst [vmem:[%s517] sm:$0xff] %v770
        %v772 = vadd.f32 %v722, %v723
        %s773 = scalar_lea.vmem %s517, 8 [#allocation11]
        %v774 = vld [vmem:[%s773] sm:$0xff]
        %v775 = vadd.f32 %v774, %v772
        %776 = vst [vmem:[%s773] sm:$0xff] %v775
        %v777 = vadd.f32 %v710, %v711
        %s778 = scalar_lea.vmem %s517, 16 [#allocation11]
        %v779 = vld [vmem:[%s778] sm:$0xff]
        %v780 = vadd.f32 %v779, %v777
        %781 = vst [vmem:[%s778] sm:$0xff] %v780
        %v782 = vadd.f32 %v714, %v715
        %s783 = scalar_lea.vmem %s517, 24 [#allocation11]
        %v784 = vld [vmem:[%s783] sm:$0xff]
        %v785 = vadd.f32 %v784, %v782
        %786 = vst [vmem:[%s783] sm:$0xff] %v785
        %v787 = vadd.f32 %v756, %v757
        %s788 = scalar_lea.vmem %s517, 32 [#allocation11]
        %v789 = vld [vmem:[%s788] sm:$0xff]
        %v790 = vadd.f32 %v789, %v787
        %791 = vst [vmem:[%s788] sm:$0xff] %v790
        %v792 = vadd.f32 %v760, %v761
        %s793 = scalar_lea.vmem %s517, 40 [#allocation11]
        %v794 = vld [vmem:[%s793] sm:$0xff]
        %v795 = vadd.f32 %v794, %v792
        %796 = vst [vmem:[%s793] sm:$0xff] %v795
        %v797 = vadd.f32 %v766, %v767
        %s798 = scalar_lea.vmem %s517, 48 [#allocation11]
        %v799 = vld [vmem:[%s798] sm:$0xff]
        %v800 = vadd.f32 %v799, %v797
        %801 = vst [vmem:[%s798] sm:$0xff] %v800
        %s802 = sand.u32 %s217, 1
        %s803 = scalar_lea.sflag [#allocation4], %s802
        %s804 = sand.u32 %s217, 1
        %s805 = smul.addr %s804, 56
        %s806 = scalar_lea.vmem [#allocation11], %s805
        // Predicated region
        $region65: #{tpu_custom_call.1} parent=39 // pred_check
          %p807 = pneg %p227
        $region66: #{tpu_custom_call.1} parent=39 // pred_check_branch
          %809 = sbr.rel (%p807) target = $region68
        $region67: #{tpu_custom_call.1} parent=39 // pred_region
          %s811 = ssub.s32 896, 896
          %812 = vsyncadd %s803, %s811
          %s813 = smul.addr %s34, 7
          %s814 = smul.addr %s33, 14
          %s815 = sadd.s32 %s813, %s814
          %s816 = smul.addr %s815, 128
          %s817 = scalar_lea.hbm %s5, %s816
          %s818 = sshll.u32 %s806, 4
          %s819 = int_to_ptr.vmem [resolvable:$true] %s818
          %824 = dma.vmem_to_hbm [thread:$0]  %s819, 896, %s817, %s803, 128, 128, 8
        $region68: #{tpu_custom_call.1} parent=39 // pred_fallthru
          _
      $region40: #{tpu_custom_call.1} parent=5 // pred_fallthru
        _
      %p825 = scmp.le.s32.totalorder 2, %s23
      // Predicated region
      $region69: #{tpu_custom_call.1} parent=5 // pred_check
        %p826 = pneg %p825
      $region70: #{tpu_custom_call.1} parent=5 // pred_check_branch
        %828 = sbr.rel (%p826) target = $region72
      $region71: #{tpu_custom_call.1} parent=5 // pred_region
        %s829 = ssub.s32 %s23, 2
        // Predicated region
        $region73: #{tpu_custom_call.1} parent=71 // pred_check
          %p830 = pneg %p233
        $region74: #{tpu_custom_call.1} parent=71 // pred_check_branch
          %832 = sbr.rel (%p830) target = $region76
        $region75: #{tpu_custom_call.1} parent=71 // pred_region
          %s833 = sand.u32 %s218, 1
          %s834 = scalar_lea.sflag [#allocation4], %s833
          %s835 = sand.u32 %s218, 1
          %s836 = smul.addr %s835, 56
          %s837 = scalar_lea.vmem [#allocation11], %s836
          %838 = dma.done %s834, 896
        $region76: #{tpu_custom_call.1} parent=71 // pred_fallthru
          _
      $region72: #{tpu_custom_call.1} parent=5 // pred_fallthru
        _
    $region6: #{tpu_custom_call.1} parent=1 // loop_footer
      %s27 = sadd.s32 1, %s23
    $region7: #{tpu_custom_call.1} parent=1 // loop_footer_branch
      %22 = sbr.rel target = $region3
    $region8: #{tpu_custom_call.1} parent=1 // loop_exit
      _
    %839 = vsyncpa [#allocation3], 1
    %s840 = scalar_lea.sflag [#allocation3], 1
    %841 = vsyncpa %s840, 1
    %842 = vsyncpa [#allocation6], 1
    %s843 = scalar_lea.sflag [#allocation6], 1
    %844 = vsyncpa %s843, 1
    %845 = vsyncpa [#allocation9], 1
    %s846 = scalar_lea.sflag [#allocation9], 1
    %847 = vsyncpa %s846, 1
    %848 = vsyncpa [#allocation4], 1
    %s849 = scalar_lea.sflag [#allocation4], 1
    %850 = vsyncpa %s849, 1

</llo_original>
